<compile_context>
chip_gen: v7x
topology: tpu7x:2x2x1
jax: 0.10.0
libtpu: 0.0.40
codegen_flags: <defaults>
</compile_context>

<pallas_src>
import jax
import jax.numpy as jnp
from jax.experimental import pallas as pl
from jax.experimental.pallas import tpu as pltpu


def _round_up(n, m):
    return ((n + m - 1) // m) * m


def _l2_normalize_kernel(x_ref, o_ref):
    x = x_ref[...]
    xf = x.astype(jnp.float32)
    # Row sum-of-squares, accumulated in f32.
    sq_sum = jnp.sum(xf * xf, axis=-1, keepdims=True)            # (tile_b, 1)
    # max(||x||, eps) == sqrt(max(||x||^2, eps^2)); rsqrt runs on the EUP
    # (its own VLIW slot), leaving the VPU with one multiply per element.
    # (Not bit-faithful to torch only when ||x||^2 underflows below 1e-24.)
    inv = jax.lax.rsqrt(jnp.maximum(sq_sum, jnp.float32(1e-24)))
    # Scale in the input dtype: avoids a tile-sized f32 temp for bf16 inputs
    # and halves the final VPU multiply width on v6e/v7x.
    o_ref[...] = (x * inv.astype(x.dtype)).astype(o_ref.dtype)


def head_forward(x, *, tile_bytes=None):
    """JAX/Pallas equivalent of Head.forward (hidden_size is unused, as in PyTorch)."""
    B, H = x.shape
    dtype = x.dtype
    itemsize = jnp.dtype(dtype).itemsize
    row_mult = {4: 8, 2: 16, 1: 32}.get(itemsize, 8)   # sublane packing

    # --- generation-aware VMEM budget ------------------------------------
    try:
        vmem_capacity = int(pltpu.get_tpu_info().vmem_capacity_bytes)
    except Exception:
        vmem_capacity = 64 * 1024 * 1024   # most conservative (v7x per-TC)

    if tile_bytes is None:
        # ~6 in-flight copies (in/out double buffers + f32 temps) should stay
        # well inside scoped VMEM: ~5.3 MiB tiles on v7x, 8 MiB on v5e/v6e.
        tile_bytes = max(1 << 20, min(vmem_capacity // 12, 8 * 1024 * 1024))

    # --- batch tiling ------------------------------------------------------
    row_bytes = max(1, H * itemsize)
    rows_cap = max(row_mult, (tile_bytes // row_bytes) // row_mult * row_mult)

    # Aim for >= 4 grid steps when the batch allows it (2 TensorCores on v7x,
    # plus DMA/compute overlap); rebalance so padding waste per tile is < row_mult.
    max_tiles = pl.cdiv(B, row_mult)
    target_tiles = min(4, max_tiles)
    ntiles = max(pl.cdiv(B, rows_cap), target_tiles)
    tile_b = _round_up(pl.cdiv(B, ntiles), row_mult)
    if tile_b >= B:
        tile_b = B                      # single full block (always a legal shape)
    grid = (pl.cdiv(B, tile_b),)

    # --- VMEM limit derived from the actual block footprint ----------------
    block_bytes = tile_b * H * itemsize
    f32_bytes = tile_b * H * 4
    vmem_needed = 4 * block_bytes + 3 * f32_bytes + (2 << 20)
    vmem_limit = int(min(max(vmem_needed, 32 << 20), vmem_capacity * 3 // 4))
    # TODO(synk): for extremely wide H (where even a row_mult-row block blows the
    # VMEM budget) a second grid axis over H with a two-pass sq-sum accumulator
    # would be needed; ViT hidden sizes (768/1024/...) are far below that limit.

    return pl.pallas_call(
        _l2_normalize_kernel,
        out_shape=jax.ShapeDtypeStruct((B, H), dtype),
        grid=grid,
        in_specs=[pl.BlockSpec((tile_b, H), lambda i: (i, 0))],
        out_specs=pl.BlockSpec((tile_b, H), lambda i: (i, 0)),
        compiler_params=pltpu.CompilerParams(
            dimension_semantics=("parallel",),   # shard batch tiles across TCs
            vmem_limit_bytes=vmem_limit,
        ),
    )(x)


def _ref_normalize(x):
    xf = x.astype(jnp.float32)
    norm = jnp.sqrt(jnp.sum(xf * xf, axis=1, keepdims=True))
    return (xf / jnp.maximum(norm, 1e-12)).astype(x.dtype)


if __name__ == "__main__":
    # Head(__init__) declares no parameters, so nothing to initialize.
    key = jax.random.PRNGKey(0)

    # Case 1: small, unaligned shape -> single full-array block (no padding path).
    x1 = jax.random.normal(key, (2, 32), dtype=jnp.float32)
    out1 = jax.block_until_ready(head_forward(x1))
    assert out1.shape == (2, 32)
    assert jnp.allclose(out1, _ref_normalize(x1), atol=1e-5, rtol=1e-5), "case 1 mismatch"

    # Case 2: aligned shape with a small forced tile -> multi-tile grid (5 steps).
    x2 = jax.random.normal(jax.random.PRNGKey(1), (40, 256), dtype=jnp.float32)
    out2 = jax.block_until_ready(head_forward(x2, tile_bytes=8 * 256 * 4))
    assert out2.shape == (40, 256)
    assert jnp.allclose(out2, _ref_normalize(x2), atol=1e-5, rtol=1e-5), "case 2 mismatch"

    # Case 3: unaligned H and a partial last batch block (no pad, no slice).
    x3 = jax.random.normal(jax.random.PRNGKey(2), (10, 100), dtype=jnp.float32)
    out3 = jax.block_until_ready(head_forward(x3))
    assert out3.shape == (10, 100)
    assert jnp.allclose(out3, _ref_normalize(x3), atol=1e-5, rtol=1e-5), "case 3 mismatch"

    # Case 4: bf16 input (f32 accumulation, bf16 scale).
    x4 = jax.random.normal(jax.random.PRNGKey(3), (40, 256), dtype=jnp.float32).astype(jnp.bfloat16)
    out4 = jax.block_until_ready(head_forward(x4))
    assert out4.shape == (40, 256) and out4.dtype == jnp.bfloat16
    assert jnp.allclose(out4.astype(jnp.float32),
                        _ref_normalize(x4).astype(jnp.float32),
                        atol=2e-2, rtol=2e-2), "case 4 mismatch"

    print("KERNEL_OK")
</pallas_src>

<mosaic_0001>
module attributes {stable_mosaic.version = 11 : i64} {
  func.func @_l2_normalize_kernel(%arg0: i32, %arg1: memref<2x32xf32, #tpu.memory_space<vmem>>, %arg2: memref<2x32xf32, #tpu.memory_space<vmem>>) attributes {dimension_semantics = [#tpu.dimension_semantics<parallel>], iteration_bounds = array<i64: 1>, scalar_prefetch = 0 : i64, scratch_operands = 0 : i64, tpu.core_type = #tpu.core_type<tc>, window_params = [{transform_indices = @transform_0, window_bounds = array<i64: 2, 32>}, {transform_indices = @transform_1, window_bounds = array<i64: 2, 32>}]} {
    %c0 = arith.constant 0 : index
    %c0_0 = arith.constant 0 : index
    %0 = vector.load %arg1[%c0, %c0_0] : memref<2x32xf32, #tpu.memory_space<vmem>>, vector<2x32xf32>
    %1 = arith.mulf %0, %0 : vector<2x32xf32>
    %cst = arith.constant dense<0.000000e+00> : vector<2xf32>
    %2 = vector.multi_reduction <add>, %1, %cst [1] : vector<2x32xf32> to vector<2xf32>
    %3 = vector.shape_cast %2 : vector<2xf32> to vector<2x1xf32>
    %cst_1 = arith.constant 1.000000e-24 : f32
    %4 = vector.broadcast %cst_1 : f32 to vector<2x1xf32>
    %5 = arith.maximumf %3, %4 : vector<2x1xf32>
    %6 = math.rsqrt %5 : vector<2x1xf32>
    %7 = vector.broadcast %6 : vector<2x1xf32> to vector<2x32xf32>
    %8 = arith.mulf %0, %7 : vector<2x32xf32>
    %c0_2 = arith.constant 0 : index
    %c0_3 = arith.constant 0 : index
    %9 = vector.load %arg2[%c0_2, %c0_3] : memref<2x32xf32, #tpu.memory_space<vmem>>, vector<2x32xf32>
    tpu.vector_store %arg2[%c0_2, %c0_3], %8 {strides = array<i32>} : memref<2x32xf32, #tpu.memory_space<vmem>>, vector<2x32xf32>,
    return
  }
  func.func @transform_0(%arg0: i32) -> (i32, i32) {
    %c0_i32 = arith.constant 0 : i32
    %c0_i32_0 = arith.constant 0 : i32
    return %arg0, %c0_i32 : i32, i32
  }
  func.func @transform_1(%arg0: i32) -> (i32, i32) {
    %c0_i32 = arith.constant 0 : i32
    %c0_i32_0 = arith.constant 0 : i32
    return %arg0, %c0_i32 : i32, i32
  }
}

</mosaic_0001>

<llo_original>
// kernel: tpu_custom_call.1
$region0: #{tpu_custom_call.1}
  #allocation0 [shape = 'u32[]', space=smem, size = 0x4, offset = 0x4, fixed_abs, tag = 'smem constant byte address 0x4 - core index']
  #allocation1 [shape = 'u32[144,128]{1,0:T(1,128)}', space=vmem, size = 0x12000, scoped, tag = 'internal scratch']
  %s0 = inlined_call_operand.hbm [shape: f32[2,32], index: 0, kind: input, shape index: {}]
  %s1 = inlined_call_operand.hbm [shape: f32[2,32], index: 1, kind: output, shape index: {}]
  %s2 = sld [smem:[#allocation0]]
  $region18: #{tpu_custom_call.1} parent=0
    _
  %s4 = ssub.s32 1, %s2
  %s5 = scalar_select 0, %s4, %s2
  $region1: #{tpu_custom_call.1} parent=0
    #allocation2 [shape = 'u8[1024]{0}', space=vmem, size = 0x400, scoped, tag = 'input window, operand 0, single buffered']
    #allocation3 [shape = 's32[1]{0}', space=sflag, size = 0x4, scoped, tag = 'scoped memory for tpu_custom_call.1']
    #allocation4 [shape = 's32[1]{0}', space=sflag, size = 0x4, scoped, tag = 'scoped memory for tpu_custom_call.1']
    #allocation5 [shape = 'u8[1024]{0}', space=vmem, size = 0x400, scoped, tag = 'output window, operand 0, single buffered']
    %6 = vsyncpa [#allocation3], 0
    %7 = vsyncpa [#allocation4], 0
    // Predicated region
    $region2: #{tpu_custom_call.1} parent=1 // pred_check
      _
    $region3: #{tpu_custom_call.1} parent=1 // pred_check_branch
      %9 = sbr.rel (0) target = $region5
    $region4: #{tpu_custom_call.1} parent=1 // pred_region
      %s11 = ssub.s32 32, 32
      %12 = vsyncadd [#allocation3], %s11
      %s14 = sshll.u32 [#allocation2], 4
      %s15 = int_to_ptr.vmem [resolvable:$true] %s14
      %17 = dma.hbm_to_vmem [thread:$0]  %s0, 32, %s15, [#allocation3]
    $region5: #{tpu_custom_call.1} parent=1 // pred_fallthru
      _
    // Predicated region
    $region6: #{tpu_custom_call.1} parent=1 // pred_check
      _
    $region7: #{tpu_custom_call.1} parent=1 // pred_check_branch
      %19 = sbr.rel (0) target = $region9
    $region8: #{tpu_custom_call.1} parent=1 // pred_region
      %20 = dma.done [#allocation3], 32
    $region9: #{tpu_custom_call.1} parent=1 // pred_fallthru
      _
    %v21 = vld [vmem:[#allocation2] sm:$0x3]
    %v22 = vmul.f32 %v21, %v21
    %vm23 = vcmask 254976
    %v24 = vsel %vm23, %v22, 0.0
    %25 = vadd.xlane.f32.xlu0 %v24
    %v26 = vpop.xlane.xlu0 %25
    %v27 = vmax.f32 %v26, 1e-24
    %v28 = vrsqrt.pop %v27
    %v29 = vmul.f32 %v21, %v28
    %30 = vst.msk [vmem:[#allocation5] sm:$0x3] %vm23, %v29
    // Predicated region
    $region10: #{tpu_custom_call.1} parent=1 // pred_check
      _
    $region11: #{tpu_custom_call.1} parent=1 // pred_check_branch
      %32 = sbr.rel (0) target = $region13
    $region12: #{tpu_custom_call.1} parent=1 // pred_region
      %s34 = ssub.s32 32, 32
      %35 = vsyncadd [#allocation4], %s34
      %s37 = sshll.u32 [#allocation5], 4
      %s38 = int_to_ptr.vmem [resolvable:$true] %s37
      %40 = dma.vmem_to_hbm [thread:$0]  %s38, 32, %s1, [#allocation4]
    $region13: #{tpu_custom_call.1} parent=1 // pred_fallthru
      _
    // Predicated region
    $region14: #{tpu_custom_call.1} parent=1 // pred_check
      _
    $region15: #{tpu_custom_call.1} parent=1 // pred_check_branch
      %42 = sbr.rel (0) target = $region17
    $region16: #{tpu_custom_call.1} parent=1 // pred_region
      %43 = dma.done [#allocation4], 32
    $region17: #{tpu_custom_call.1} parent=1 // pred_fallthru
      _
    %44 = vsyncpa [#allocation3], 1
    %45 = vsyncpa [#allocation4], 1

</llo_original>
